<compile_context>
chip_gen: v7x
topology: tpu7x:2x2x1
jax: 0.10.0
libtpu: 0.0.40
codegen_flags: <defaults>
</compile_context>

<pallas_src>
import functools

import jax
import jax.numpy as jnp
from jax.experimental import pallas as pl
from jax.experimental.pallas import tpu as pltpu


def _linear_kernel(x_ref, w_ref, b_ref, o_ref):
    # x_ref: (tm, K_eff)  w_ref: (K_eff, N_eff)  b_ref: (1, N_eff)  o_ref: (tm, N_eff)
    acc = jnp.dot(x_ref[...], w_ref[...], preferred_element_type=jnp.float32)
    o_ref[...] = (acc + b_ref[...].astype(jnp.float32)).astype(o_ref.dtype)


def _pick_tile_m(m_eff, k_eff, n_eff, itemsize):
    """Largest row tile that keeps the double-buffered x/out blocks well under
    the scoped-VMEM default and leaves >=4 grid steps (megacore) when M is big."""
    budget = 20 * 1024 * 1024                     # bytes for double-buffered x + out
    per_row = 2 * (k_eff + n_eff) * itemsize
    tm = min(4096, max(8, budget // per_row))
    if m_eff > tm and pl.cdiv(m_eff, tm) < 4:
        tm = pl.cdiv(m_eff, 4)                    # keep a few steps for 2-TC chips
    tm = max(8, (tm // 8) * 8)                    # sublane multiple
    if m_eff <= tm:
        tm = m_eff                                # single full-extent block
    return tm


@functools.partial(jax.jit, static_argnames=("tm",))
def conv2d_inplace_linear(x, weight, bias, *, tm=None):
    """Forward pass of Conv2DInplaceLinear.

    x:      (..., in_features)  — 2-D, 3-D or 4-D, channels last
    weight: (out_features, in_features)   (PyTorch Conv2d weight squeezed)
    bias:   (out_features,)
    """
    orig_shape = x.shape
    k = orig_shape[-1]
    n = weight.shape[0]

    m = 1
    for d in orig_shape[:-1]:
        m *= d

    # ---- lane-dense repack: fold rows into the channel axis ----------------
    f = 1
    if k < 128 and 128 % k == 0:
        cand = 128 // k
        # Only fold if row count allows it and the block-diag weight stays small.
        if m % cand == 0 and (cand * k) * (cand * n) * jnp.dtype(weight.dtype).itemsize <= (4 << 20):
            f = cand

    k_eff, n_eff, m_eff = f * k, f * n, m // f

    x2 = x.reshape(m_eff, k_eff)                  # contiguous, free
    w_t = weight.T.astype(x.dtype)                # (K, N)
    if f > 1:
        # Block-diagonal replication: out_packed[r, j*N:(j+1)*N] = x[f*r+j] @ W^T
        w_eff = jnp.kron(jnp.eye(f, dtype=w_t.dtype), w_t)    # (f*K, f*N)
        b_eff = jnp.tile(bias, f).reshape(1, n_eff)
    else:
        w_eff = w_t
        b_eff = bias.reshape(1, n_eff)

    if tm is None:
        tm = _pick_tile_m(m_eff, k_eff, n_eff, jnp.dtype(x.dtype).itemsize)
    tm = min(tm, m_eff)

    out = pl.pallas_call(
        _linear_kernel,
        out_shape=jax.ShapeDtypeStruct((m_eff, n_eff), x.dtype),
        grid_spec=pltpu.PrefetchScalarGridSpec(
            num_scalar_prefetch=0,
            grid=(pl.cdiv(m_eff, tm),),           # ragged last block: stores masked
            in_specs=[
                pl.BlockSpec((tm, k_eff), lambda i: (i, 0)),
                pl.BlockSpec((k_eff, n_eff), lambda i: (0, 0)),   # resident weight
                pl.BlockSpec((1, n_eff), lambda i: (0, 0)),       # resident bias
            ],
            out_specs=pl.BlockSpec((tm, n_eff), lambda i: (i, 0)),
        ),
        compiler_params=pltpu.CompilerParams(
            dimension_semantics=("parallel",)),
    )(x2, w_eff, b_eff)

    # (M/f, f*N) -> original leading dims + N : contiguous reshapes, free.
    return out.reshape(*orig_shape[:-1], n)


if __name__ == "__main__":
    key = jax.random.PRNGKey(0)
    k_x, k_w, k_b = jax.random.split(key, 3)

    # Module config: Conv2DInplaceLinear(in_features=32, out_features=64)
    in_features, out_features = 32, 64

    # Deterministic parameter init (synthetic; mimics Conv2d kaiming-uniform bound).
    bound = 1.0 / (in_features ** 0.5)
    weight = jax.random.uniform(
        k_w, (out_features, in_features), jnp.float32, -bound, bound)
    bias = jax.random.uniform(
        k_b, (out_features,), jnp.float32, -bound, bound)

    # 4-D channel-last input (as the SAM model feeds it): (B, H, W, C_in)
    x4 = jax.random.normal(k_x, (2, 8, 8, in_features), jnp.float32)
    out4 = jax.block_until_ready(conv2d_inplace_linear(x4, weight, bias))
    ref4 = jnp.einsum("bhwk,ok->bhwo", x4, weight) + bias
    assert out4.shape == (2, 8, 8, out_features)
    assert jnp.allclose(out4, ref4, atol=1e-5, rtol=1e-5)

    # 3-D path (B, S, C_in)
    x3 = jax.random.normal(k_x, (2, 16, in_features), jnp.float32)
    out3 = jax.block_until_ready(conv2d_inplace_linear(x3, weight, bias))
    ref3 = jnp.einsum("bsk,ok->bso", x3, weight) + bias
    assert out3.shape == (2, 16, out_features)
    assert jnp.allclose(out3, ref3, atol=1e-5, rtol=1e-5)

    # 2-D path with a row count that disables the lane-fold (f = 1 fallback).
    x2 = jax.random.normal(k_x, (5, in_features), jnp.float32)
    out2 = jax.block_until_ready(conv2d_inplace_linear(x2, weight, bias))
    ref2 = x2 @ weight.T + bias
    assert out2.shape == (5, out_features)
    assert jnp.allclose(out2, ref2, atol=1e-5, rtol=1e-5)

    # Ragged-grid path: M_eff = 9 rows with tm = 8 forces a masked last block.
    x_r = jax.random.normal(k_x, (2, 18, in_features), jnp.float32)
    out_r = jax.block_until_ready(conv2d_inplace_linear(x_r, weight, bias, tm=8))
    ref_r = jnp.einsum("bsk,ok->bso", x_r, weight) + bias
    assert jnp.allclose(out_r, ref_r, atol=1e-5, rtol=1e-5)

    print("KERNEL_OK")
</pallas_src>

<mosaic_0001>
module attributes {stable_mosaic.version = 11 : i64} {
  func.func @_linear_kernel(%arg0: i32, %arg1: memref<32x128xf32, #tpu.memory_space<vmem>>, %arg2: memref<128x256xf32, #tpu.memory_space<vmem>>, %arg3: memref<1x256xf32, #tpu.memory_space<vmem>>, %arg4: memref<32x256xf32, #tpu.memory_space<vmem>>) attributes {dimension_semantics = [#tpu.dimension_semantics<parallel>], iteration_bounds = array<i64: 1>, scalar_prefetch = 0 : i64, scratch_operands = 0 : i64, tpu.core_type = #tpu.core_type<tc>, window_params = [{transform_indices = @transform_0, window_bounds = array<i64: 32, 128>}, {pipeline_mode = #tpu.pipeline_mode<synchronous>, transform_indices = @transform_1, window_bounds = array<i64: 128, 256>}, {pipeline_mode = #tpu.pipeline_mode<synchronous>, transform_indices = @transform_2, window_bounds = array<i64: 1, 256>}, {transform_indices = @transform_3, window_bounds = array<i64: 32, 256>}]} {
    %c0 = arith.constant 0 : index
    %c0_0 = arith.constant 0 : index
    %0 = vector.load %arg1[%c0, %c0_0] : memref<32x128xf32, #tpu.memory_space<vmem>>, vector<32x128xf32>
    %c0_1 = arith.constant 0 : index
    %c0_2 = arith.constant 0 : index
    %1 = vector.load %arg2[%c0_1, %c0_2] : memref<128x256xf32, #tpu.memory_space<vmem>>, vector<128x256xf32>
    %cst = arith.constant dense<0.000000e+00> : vector<32x256xf32>
    %2 = tpu.matmul %0, %1, %cst {dimension_numbers = #tpu.dot_dimension_numbers<[1], [0], [0], [1], [0, 0, 1, 1], [], []>} : vector<32x128xf32>, vector<128x256xf32>, vector<32x256xf32> -> vector<32x256xf32>
    %c0_3 = arith.constant 0 : index
    %c0_4 = arith.constant 0 : index
    %3 = vector.load %arg3[%c0_3, %c0_4] : memref<1x256xf32, #tpu.memory_space<vmem>>, vector<1x256xf32>
    %4 = vector.broadcast %3 : vector<1x256xf32> to vector<32x256xf32>
    %5 = arith.addf %2, %4 : vector<32x256xf32>
    %c0_5 = arith.constant 0 : index
    %c0_6 = arith.constant 0 : index
    %6 = vector.load %arg4[%c0_5, %c0_6] : memref<32x256xf32, #tpu.memory_space<vmem>>, vector<32x256xf32>
    tpu.vector_store %arg4[%c0_5, %c0_6], %5 {strides = array<i32>} : memref<32x256xf32, #tpu.memory_space<vmem>>, vector<32x256xf32>,
    return
  }
  func.func @transform_0(%arg0: i32) -> (i32, i32) {
    %c0_i32 = arith.constant 0 : i32
    %c0_i32_0 = arith.constant 0 : i32
    return %arg0, %c0_i32 : i32, i32
  }
  func.func @transform_1(%arg0: i32) -> (i32, i32) {
    %c0_i32 = arith.constant 0 : i32
    %c0_i32_0 = arith.constant 0 : i32
    %c0_i32_1 = arith.constant 0 : i32
    return %c0_i32, %c0_i32_0 : i32, i32
  }
  func.func @transform_2(%arg0: i32) -> (i32, i32) {
    %c0_i32 = arith.constant 0 : i32
    %c0_i32_0 = arith.constant 0 : i32
    %c0_i32_1 = arith.constant 0 : i32
    return %c0_i32, %c0_i32_0 : i32, i32
  }
  func.func @transform_3(%arg0: i32) -> (i32, i32) {
    %c0_i32 = arith.constant 0 : i32
    %c0_i32_0 = arith.constant 0 : i32
    return %arg0, %c0_i32 : i32, i32
  }
}

</mosaic_0001>

<llo_original>
// kernel: tile.9
$region0: #{tile.9}
  %s0 = inlined_call_operand.vmem [shape: f32[4,64], index: 0, kind: input, shape index: {}]
  %s1 = inlined_call_operand.vmem [shape: f32[1,256], index: 1, kind: output, shape index: {}]
  $region1: #{tile.9} parent=0
    #allocation0 [shape = 'u8[8192]{0}', space=vmem, size = 0x2000, scoped, tag = 'scoped mem for output reshape']
    #allocation1 [shape = 'u8[4096]{0}', space=vmem, size = 0x1000, scoped, tag = 'scoped mem for input reshape']
    %s3 = sshllo.u32 0, 4
    %v4 = vld [vmem:[%s0] sm:%s3]
    %5 = vst [vmem:[#allocation1] sm:%s3] %v4
    %s6 = smov 3
    %v7 = vld [vmem:[#allocation1] ss:$2 sm:%s6]
    %vm8 = vcmask 523264
    %9 = vst.msk [vmem:[#allocation0] ss:$8 sm:$0x3] %vm8, %v7
    %s10 = scalar_lea.vmem [#allocation1], 1
    %s11 = smov 3
    %v12 = vld [vmem:[%s10] ss:$2 sm:%s11]
    %13 = vrot.lane.b32.xlu0 %v12, 64
    %v14 = vpop.permute.xlu0 %13
    %vm15 = vcmask 1048064
    %16 = vst.msk [vmem:[#allocation0] ss:$8 sm:$0x3] %vm15, %v14
    %s18 = sshllo.u32 0, 1
    %v20 = vld [vmem:[#allocation0] sm:%s18]
    %s21 = sshllo.u32 0, 1
    %22 = vst [vmem:[%s1] sm:%s21] %v20
    %s23 = scalar_lea.vmem [#allocation0], 8
    %v24 = vld [vmem:[%s23] sm:%s18]
    %s25 = sshllo.u32 0, 1
    %s26 = scalar_lea.vmem %s1, 1
    %27 = vst [vmem:[%s26] sm:%s25] %v24

// kernel: tile.8
$region0: #{tile.8}
  #allocation0 [shape = 's32[1]{0}', space=sflag, size = 0x4, scoped, tag = 'scoped memory for tile.8']
  %s0 = inlined_call_operand.vmem [shape: f32[64], index: 0, kind: input, shape index: {}]
  %s1 = inlined_call_operand.vmem [shape: f32[4,64], index: 1, kind: output, shape index: {}]
  // Predicated region
  $region2: #{tile.8} parent=0 // pred_check
    _
  $region3: #{tile.8} parent=0 // pred_check_branch
    %3 = sbr.rel (0) target = $region5
  $region4: #{tile.8} parent=0 // pred_region
    _
  $region5: #{tile.8} parent=0 // pred_fallthru
    _
  %v4 = vld [vmem:[%s0] ss:$0 sm:$0xff]
  %5 = vst [vmem:[%s1] sm:$0xf] %v4

// kernel: conv2d_inplace_linear.1
$region0: #{conv2d_inplace_linear.1}
  #allocation0 [shape = 'u32[]', space=smem, size = 0x4, offset = 0x4, fixed_abs, tag = 'smem constant byte address 0x4 - core index']
  #allocation1 [shape = 'u32[144,128]{1,0:T(1,128)}', space=vmem, size = 0x12000, scoped, tag = 'internal scratch']
  %s0 = inlined_call_operand.vmem [shape: f32[32,128], index: 0, kind: input, shape index: {}]
  %s1 = inlined_call_operand.vmem [shape: f32[128,256], index: 1, kind: input, shape index: {}]
  %s2 = inlined_call_operand.vmem [shape: f32[1,256], index: 2, kind: input, shape index: {}]
  %s3 = inlined_call_operand.vmem [shape: f32[32,256], index: 3, kind: output, shape index: {}]
  %s4 = sld [smem:[#allocation0]]
  $region22: #{conv2d_inplace_linear.1} parent=0
    _
  %s6 = ssub.s32 1, %s4
  %s7 = scalar_select 0, %s6, %s4
  // Predicated region
  $region2: #{conv2d_inplace_linear.1} parent=0 // pred_check
    _
  $region3: #{conv2d_inplace_linear.1} parent=0 // pred_check_branch
    %9 = sbr.rel (0) target = $region5
  $region4: #{conv2d_inplace_linear.1} parent=0 // pred_region
    _
  $region5: #{conv2d_inplace_linear.1} parent=0 // pred_fallthru
    _
  // Predicated region
  $region6: #{conv2d_inplace_linear.1} parent=0 // pred_check
    _
  $region7: #{conv2d_inplace_linear.1} parent=0 // pred_check_branch
    %11 = sbr.rel (0) target = $region9
  $region8: #{conv2d_inplace_linear.1} parent=0 // pred_region
    _
  $region9: #{conv2d_inplace_linear.1} parent=0 // pred_fallthru
    _
  // Predicated region
  $region10: #{conv2d_inplace_linear.1} parent=0 // pred_check
    _
  $region11: #{conv2d_inplace_linear.1} parent=0 // pred_check_branch
    %13 = sbr.rel (0) target = $region13
  $region12: #{conv2d_inplace_linear.1} parent=0 // pred_region
    _
  $region13: #{conv2d_inplace_linear.1} parent=0 // pred_fallthru
    _
  %v14 = vld [vmem:[%s0] sm:$0xff]
  %v15 = vld [vmem:[%s0 + $0x8] sm:$0xff]
  %v16 = vld [vmem:[%s0 + $0x10] sm:$0xff]
  %v17 = vld [vmem:[%s0 + $0x18] sm:$0xff]
  %v18 = vld [vmem:[%s1] sm:$0xff]
  %v19 = vld [vmem:[%s1 + $0x8] sm:$0xff]
  %v20 = vld [vmem:[%s1 + $0x10] sm:$0xff]
  %v21 = vld [vmem:[%s1 + $0x18] sm:$0xff]
  %v22 = vld [vmem:[%s1 + $0x20] sm:$0xff]
  %v23 = vld [vmem:[%s1 + $0x28] sm:$0xff]
  %v24 = vld [vmem:[%s1 + $0x30] sm:$0xff]
  %v25 = vld [vmem:[%s1 + $0x38] sm:$0xff]
  %v26 = vld [vmem:[%s1 + $0x40] sm:$0xff]
  %v27 = vld [vmem:[%s1 + $0x48] sm:$0xff]
  %v28 = vld [vmem:[%s1 + $0x50] sm:$0xff]
  %v29 = vld [vmem:[%s1 + $0x58] sm:$0xff]
  %v30 = vld [vmem:[%s1 + $0x60] sm:$0xff]
  %v31 = vld [vmem:[%s1 + $0x68] sm:$0xff]
  %v32 = vld [vmem:[%s1 + $0x70] sm:$0xff]
  %v33 = vld [vmem:[%s1 + $0x78] sm:$0xff]
  %v34 = vld [vmem:[%s1 + $0x80] sm:$0xff]
  %v35 = vld [vmem:[%s1 + $0x88] sm:$0xff]
  %v36 = vld [vmem:[%s1 + $0x90] sm:$0xff]
  %v37 = vld [vmem:[%s1 + $0x98] sm:$0xff]
  %v38 = vld [vmem:[%s1 + $0xa0] sm:$0xff]
  %v39 = vld [vmem:[%s1 + $0xa8] sm:$0xff]
  %v40 = vld [vmem:[%s1 + $0xb0] sm:$0xff]
  %v41 = vld [vmem:[%s1 + $0xb8] sm:$0xff]
  %v42 = vld [vmem:[%s1 + $0xc0] sm:$0xff]
  %v43 = vld [vmem:[%s1 + $0xc8] sm:$0xff]
  %v44 = vld [vmem:[%s1 + $0xd0] sm:$0xff]
  %v45 = vld [vmem:[%s1 + $0xd8] sm:$0xff]
  %v46 = vld [vmem:[%s1 + $0xe0] sm:$0xff]
  %v47 = vld [vmem:[%s1 + $0xe8] sm:$0xff]
  %v48 = vld [vmem:[%s1 + $0xf0] sm:$0xff]
  %v49 = vld [vmem:[%s1 + $0xf8] sm:$0xff]
  %v50 = vld [vmem:[%s2] sm:$0x3]
  %v52 = vlaneseq
  %v53 = vshrl.u32 %v52, 7
  %v54 = vsub.s32 0, %v53
  %v55 = vrot.slane %v50, %v54
  %v56 = vlaneseq
  %v57 = vshrl.u32 %v56, 7
  %v58 = vsub.s32 1, %v57
  %v59 = vrot.slane %v50, %v58
  %62 = vmatprep.subr.mxu0 %v19
  %63 = vmatpush1.msra.mxu0 %v18
  %64 = vmatprep.subr.mxu0 %v21
  %65 = vmatpush1.msra.mxu0 %v20
  %66 = vmatprep.subr.mxu0 %v23
  %67 = vmatpush1.msra.mxu0 %v22
  %68 = vmatprep.subr.mxu0 %v25
  %69 = vmatpush1.msra.mxu0 %v24
  %70 = vmatprep.subr.mxu0 %v27
  %71 = vmatpush1.msra.mxu0 %v26
  %72 = vmatprep.subr.mxu0 %v29
  %73 = vmatpush1.msra.mxu0 %v28
  %74 = vmatprep.subr.mxu0 %v31
  %75 = vmatpush1.msra.mxu0 %v30
  %76 = vmatprep.subr.mxu0 %v33
  %77 = vmatpush1.msra.mxu0 %v32
  %78 = vmatprep.subr.mxu0 %v35
  %79 = vmatpush1.msra.mxu0 %v34
  %80 = vmatprep.subr.mxu0 %v37
  %81 = vmatpush1.msra.mxu0 %v36
  %82 = vmatprep.subr.mxu0 %v39
  %83 = vmatpush1.msra.mxu0 %v38
  %84 = vmatprep.subr.mxu0 %v41
  %85 = vmatpush1.msra.mxu0 %v40
  %86 = vmatprep.subr.mxu0 %v43
  %87 = vmatpush1.msra.mxu0 %v42
  %88 = vmatprep.subr.mxu0 %v45
  %89 = vmatpush1.msra.mxu0 %v44
  %90 = vmatprep.subr.mxu0 %v47
  %91 = vmatpush1.msra.mxu0 %v46
  %92 = vmatprep.subr.mxu0 %v49
  %93 = vmatpush1.msra.mxu0 %v48
  %94 = vmatprep.subr.mxu0 0.0
  %95 = vmatpush1.msra.mxu0 0.0
  %96 = vmatprep.subr.mxu0 0.0
  %97 = vmatpush1.msra.mxu0 0.0
  %98 = vmatprep.subr.mxu0 0.0
  %99 = vmatpush1.msra.mxu0 0.0
  %100 = vmatprep.subr.mxu0 0.0
  %101 = vmatpush1.msra.mxu0 0.0
  %102 = vmatprep.subr.mxu0 0.0
  %103 = vmatpush1.msra.mxu0 0.0
  %104 = vmatprep.subr.mxu0 0.0
  %105 = vmatpush1.msra.mxu0 0.0
  %106 = vmatprep.subr.mxu0 0.0
  %107 = vmatpush1.msra.mxu0 0.0
  %108 = vmatprep.subr.mxu0 0.0
  %109 = vmatpush1.msra.mxu0 0.0
  %110 = vmatprep.subr.mxu0 0.0
  %111 = vmatpush1.msra.mxu0 0.0
  %112 = vmatprep.subr.mxu0 0.0
  %113 = vmatpush1.msra.mxu0 0.0
  %114 = vmatprep.subr.mxu0 0.0
  %115 = vmatpush1.msra.mxu0 0.0
  %116 = vmatprep.subr.mxu0 0.0
  %117 = vmatpush1.msra.mxu0 0.0
  %118 = vmatprep.subr.mxu0 0.0
  %119 = vmatpush1.msra.mxu0 0.0
  %120 = vmatprep.subr.mxu0 0.0
  %121 = vmatpush1.msra.mxu0 0.0
  %122 = vmatprep.subr.mxu0 0.0
  %123 = vmatpush1.msra.mxu0 0.0
  %124 = vmatprep.subr.mxu0 0.0
  %125 = vmatpush1.msra.mxu0 0.0
  %126 = vmatprep.mubr.f32.mxu0 0.0
  %127 = vmatmul.mubr.f32.gmra.mrb[0].mxu0 %v14
  %v128 = vpop.f32.mrb[0].mxu0
  %v129 = vadd.f32 %v55, %v128
  %v130 = vpop.f32.mrb[0].mxu0
  %v131 = vadd.f32 %v59, %v130
  %132 = vmatprep.mubr.f32.mxu0 0.0
  %133 = vmatmul.mubr.f32.gmra.mrb[0].mxu0 %v15
  %v134 = vpop.f32.mrb[0].mxu0
  %v135 = vadd.f32 %v55, %v134
  %v136 = vpop.f32.mrb[0].mxu0
  %v137 = vadd.f32 %v59, %v136
  %138 = vmatprep.mubr.f32.mxu0 0.0
  %139 = vmatmul.mubr.f32.gmra.mrb[0].mxu0 %v16
  %v140 = vpop.f32.mrb[0].mxu0
  %v141 = vadd.f32 %v55, %v140
  %v142 = vpop.f32.mrb[0].mxu0
  %v143 = vadd.f32 %v59, %v142
  %144 = vmatprep.mubr.f32.mxu0 0.0
  %145 = vmatmul.mubr.f32.gmra.mrb[0].mxu0 %v17
  %v146 = vpop.f32.mrb[0].mxu0
  %v147 = vadd.f32 %v55, %v146
  %v148 = vpop.f32.mrb[0].mxu0
  %v149 = vadd.f32 %v59, %v148
  %150 = vdwg.mxu0
  %151 = vst [vmem:[%s3] sm:$0xff] %v129
  %152 = vst [vmem:[%s3 + $0x8] sm:$0xff] %v131
  %153 = vst [vmem:[%s3 + $0x10] sm:$0xff] %v135
  %154 = vst [vmem:[%s3 + $0x18] sm:$0xff] %v137
  %155 = vst [vmem:[%s3 + $0x20] sm:$0xff] %v141
  %156 = vst [vmem:[%s3 + $0x28] sm:$0xff] %v143
  %157 = vst [vmem:[%s3 + $0x30] sm:$0xff] %v147
  %158 = vst [vmem:[%s3 + $0x38] sm:$0xff] %v149
  // Predicated region
  $region14: #{conv2d_inplace_linear.1} parent=0 // pred_check
    _
  $region15: #{conv2d_inplace_linear.1} parent=0 // pred_check_branch
    %160 = sbr.rel (0) target = $region17
  $region16: #{conv2d_inplace_linear.1} parent=0 // pred_region
    _
  $region17: #{conv2d_inplace_linear.1} parent=0 // pred_fallthru
    _
  // Predicated region
  $region18: #{conv2d_inplace_linear.1} parent=0 // pred_check
    _
  $region19: #{conv2d_inplace_linear.1} parent=0 // pred_check_branch
    %162 = sbr.rel (0) target = $region21
  $region20: #{conv2d_inplace_linear.1} parent=0 // pred_region
    _
  $region21: #{conv2d_inplace_linear.1} parent=0 // pred_fallthru
    _

</llo_original>
